<compile_context>
chip_gen: v7x
topology: tpu7x:2x2x1
jax: 0.10.0
libtpu: 0.0.40
codegen_flags: <defaults>
</compile_context>

<pallas_src>
import jax
import jax.numpy as jnp
from jax.experimental import pallas as pl
from jax.experimental.pallas import tpu as pltpu


def _cdiv(a, b):
    return -(-a // b)


def _round_up(x, m):
    return ((x + m - 1) // m) * m


def _sublanes(itemsize):
    # f32 -> 8, bf16/f16 -> 16, int8/fp8 -> 32 rows per vreg tile.
    return max(8, 32 // itemsize)


def _device_defaults():
    """Per-generation (block_budget_bytes, vmem_limit_bytes_or_None, tensorcores_per_chip)."""
    try:
        kind = jax.devices()[0].device_kind.lower()
    except Exception:
        kind = ""
    if "v7" in kind:
        # 64 MiB physical VMEM per TC: 2 x 12 MiB in-flight input blocks + output + headroom.
        return 12 << 20, 40 << 20, 2
    if "v6" in kind:
        return 10 << 20, 48 << 20, 1
    if "v5" in kind and ("lite" in kind or "5e" in kind):
        # Stay under the 16 MiB default scoped VMEM limit when double-buffered.
        return 5 << 20, None, 1
    # Unknown / other generations: conservative default.
    return 6 << 20, 32 << 20, 1


# ---------------------------------------------------------------------------
# Tiling selection (accounts for sublane/lane padding of the real VMEM block).
# ---------------------------------------------------------------------------

def _choose_tiling_nchw(n, c, hw, itemsize, budget, cores):
    """Tiling for the (N, C, HW) layout (C >= one sublane). Returns (tn, thw)."""
    sub = _sublanes(itemsize)
    c_eff = _round_up(c, sub)       # true sublane footprint of the C axis
    hw_eff = _round_up(hw, 128)     # true lane footprint of the spatial axis
    if c_eff * hw_eff * itemsize <= budget:
        # Whole spatial extent per block; tile the batch axis.
        thw = hw
        tn = max(1, min(n, budget // (c_eff * hw_eff * itemsize)))
    else:
        # Spatial tiling needed even for a single batch element.
        tn = 1
        thw = max(128, (budget // (c_eff * itemsize)) // 128 * 128)
    # v7x megacore: keep >= `cores` blocks on the parallel (batch) axis when possible.
    if cores > 1 and n >= cores:
        tn = max(1, min(tn, _cdiv(n, cores)))
    return tn, thw


def _choose_tiling_rows(r, hw, itemsize, budget, cores):
    """Tiling for the packed (N*C, HW) layout (small C). Returns (tr, thw)."""
    sub = _sublanes(itemsize)
    hw_eff = _round_up(hw, 128)
    if sub * hw_eff * itemsize <= budget:
        thw = hw
        tr = max(sub, (budget // (hw_eff * itemsize)) // sub * sub)
        tr = min(tr, _round_up(r, sub))
        if tr >= r:
            tr = r                  # full-dim block: always a legal block dim
    else:
        tr = sub
        thw = max(128, (budget // (sub * itemsize)) // 128 * 128)
    # v7x megacore: keep >= `cores` blocks on the parallel (rows) axis when possible.
    if cores > 1 and r >= cores * sub and _cdiv(r, tr) < cores:
        tr = _round_up(_cdiv(r, cores), sub)
    return tr, thw


# ---------------------------------------------------------------------------
# Kernels.
# ---------------------------------------------------------------------------

def _make_pool_norm_kernel(hw, thw):
    """(TN, C, THW) blocks -> running max over HW, L2-normalize over C on the last tile."""
    needs_mask = (hw % thw) != 0  # ragged spatial tail handled in-kernel (no HBM pad pass)

    def kernel(x_ref, o_ref):
        h = pl.program_id(1)

        @pl.when(h == 0)
        def _init():
            o_ref[...] = jnp.full(o_ref.shape, -jnp.inf, dtype=o_ref.dtype)

        x = x_ref[...]                                            # (TN, C, THW)
        if needs_mask:
            lane = jax.lax.broadcasted_iota(jnp.int32, x.shape, x.ndim - 1)
            idx = h * thw + lane                                  # global spatial index
            x = jnp.where(idx < hw, x, jnp.array(-jnp.inf, dtype=x.dtype))
        tile_max = jnp.max(x, axis=-1)                            # (TN, C)
        o_ref[...] = jnp.maximum(o_ref[...], tile_max[:, None, :])

        @pl.when(h == pl.num_programs(1) - 1)
        def _finalize():
            pooled = o_ref[...].astype(jnp.float32)               # (TN, 1, C)
            norm = jnp.sqrt(jnp.sum(pooled * pooled, axis=-1, keepdims=True))
            inv = pl.reciprocal(norm + 1e-7, approx=False)        # eps on the norm (torch)
            o_ref[...] = (pooled * inv).astype(o_ref.dtype)

    return kernel


def _make_rowmax_kernel(hw, thw):
    """(TR, THW) blocks -> running per-row max over HW (packed small-C path)."""
    needs_mask = (hw % thw) != 0

    def kernel(x_ref, o_ref):
        h = pl.program_id(1)

        @pl.when(h == 0)
        def _init():
            o_ref[...] = jnp.full(o_ref.shape, -jnp.inf, dtype=o_ref.dtype)

        x = x_ref[...]                                            # (TR, THW)
        if needs_mask:
            lane = jax.lax.broadcasted_iota(jnp.int32, x.shape, 1)
            idx = h * thw + lane
            x = jnp.where(idx < hw, x, jnp.array(-jnp.inf, dtype=x.dtype))
        o_ref[...] = jnp.maximum(o_ref[...], jnp.max(x, axis=-1, keepdims=True))

    return kernel


# ---------------------------------------------------------------------------
# Wrapper.
# ---------------------------------------------------------------------------

def pooling_f(x, *, block_budget_bytes=None):
    """x: (N, C, H, W) float -> (N, C, 1, 1); AdaptiveMaxPool2d(1) + L2 normalize over C."""
    if not jnp.issubdtype(x.dtype, jnp.floating):
        raise TypeError("pooling_f requires a floating-point input dtype (max / -inf init).")
    N, C, H, W = x.shape
    HW = H * W
    itemsize = jnp.dtype(x.dtype).itemsize

    budget, vmem_limit, cores = _device_defaults()
    if block_budget_bytes is not None:     # test hook / manual override
        budget = block_budget_bytes
        vmem_limit = None
    sub = _sublanes(itemsize)

    cost = pl.CostEstimate(
        flops=N * C * HW,
        transcendentals=0,
        bytes_accessed=N * C * HW * itemsize + N * C * itemsize,
    )

    if C >= sub:
        # --- Path 1: (N, C, HW) blocks, running max + in-kernel L2 normalize ----------
        tn, thw = _choose_tiling_nchw(N, C, HW, itemsize, budget, cores)
        x3 = x.reshape(N, C, HW)
        grid = (_cdiv(N, tn), _cdiv(HW, thw))
        # NOTE: when N == 1 and HW is huge, the reduction runs on a single TC on v7x;
        # a cores-way partial-max split would be needed to use both cores in that case.
        out = pl.pallas_call(
            _make_pool_norm_kernel(HW, thw),
            out_shape=jax.ShapeDtypeStruct((N, 1, C), x.dtype),
            grid_spec=pltpu.PrefetchScalarGridSpec(
                num_scalar_prefetch=0,
                grid=grid,
                in_specs=[pl.BlockSpec((tn, C, thw), lambda n, h: (n, 0, h))],
                out_specs=pl.BlockSpec((tn, 1, C), lambda n, h: (n, 0, 0)),
            ),
            compiler_params=pltpu.CompilerParams(
                dimension_semantics=("parallel", "arbitrary"),
                vmem_limit_bytes=vmem_limit,
            ),
            cost_estimate=cost,
        )(x3)
        return out.reshape(N, C)[:, :, None, None]

    # --- Path 2 (C < one sublane): pack (N, C) into the sublane axis -------------------
    R = N * C
    tr, thw = _choose_tiling_rows(R, HW, itemsize, budget, cores)
    x2 = x.reshape(R, HW)
    grid = (_cdiv(R, tr), _cdiv(HW, thw))
    pooled = pl.pallas_call(
        _make_rowmax_kernel(HW, thw),
        out_shape=jax.ShapeDtypeStruct((R, 1), x.dtype),
        grid_spec=pltpu.PrefetchScalarGridSpec(
            num_scalar_prefetch=0,
            grid=grid,
            in_specs=[pl.BlockSpec((tr, thw), lambda r, h: (r, h))],
            out_specs=pl.BlockSpec((tr, 1), lambda r, h: (r, 0)),
        ),
        compiler_params=pltpu.CompilerParams(
            dimension_semantics=("parallel", "arbitrary"),
            vmem_limit_bytes=vmem_limit,
        ),
        cost_estimate=cost,
    )(x2)
    # Tiny L2 normalize over channels (touches only N*C elements) in plain JAX.
    p = pooled.reshape(N, C).astype(jnp.float32)
    norm = jnp.sqrt(jnp.sum(p * p, axis=1, keepdims=True))
    return (p / (norm + 1e-7)).astype(x.dtype)[:, :, None, None]


def _reference(x):
    # Pure-JAX reference mirroring the PyTorch forward.
    pooled = jnp.max(x, axis=(2, 3), keepdims=True).astype(jnp.float32)   # (N, C, 1, 1)
    norm = jnp.sqrt(jnp.sum(pooled ** 2, axis=1, keepdims=True))          # (N, 1, 1, 1)
    return (pooled / (norm + 1e-7)).astype(x.dtype)


if __name__ == "__main__":
    key = jax.random.PRNGKey(0)

    # 1) Primary small test (packed small-C path, single block).
    x1 = jax.random.normal(key, (2, 4, 16, 16), dtype=jnp.float32)
    o1 = pooling_f(x1)
    jax.block_until_ready(o1)
    assert o1.shape == (2, 4, 1, 1), o1.shape
    assert jnp.allclose(o1, _reference(x1), atol=1e-5, rtol=1e-5), "mismatch (small-C)"

    # 2) C >= sublane path, whole spatial extent in one block, in-kernel normalize.
    x2 = jax.random.normal(jax.random.PRNGKey(0), (2, 8, 64, 64), dtype=jnp.float32)
    o2 = pooling_f(x2)
    jax.block_until_ready(o2)
    assert o2.shape == (2, 8, 1, 1), o2.shape
    assert jnp.allclose(o2, _reference(x2), atol=1e-5, rtol=1e-5), "mismatch (C>=8)"

    # 3) Forced tiny block budget: tiled spatial reduction + ragged-tail masking (path 1).
    x3 = jax.random.normal(jax.random.PRNGKey(0), (2, 8, 20, 20), dtype=jnp.float32)
    o3 = pooling_f(x3, block_budget_bytes=4096)
    jax.block_until_ready(o3)
    assert jnp.allclose(o3, _reference(x3), atol=1e-5, rtol=1e-5), "mismatch (ragged, C>=8)"

    # 4) Forced tiny block budget: tiled spatial reduction + ragged tail (packed path).
    x4 = jax.random.normal(jax.random.PRNGKey(0), (2, 4, 20, 20), dtype=jnp.float32)
    o4 = pooling_f(x4, block_budget_bytes=4096)
    jax.block_until_ready(o4)
    assert jnp.allclose(o4, _reference(x4), atol=1e-5, rtol=1e-5), "mismatch (ragged, small-C)"

    print("KERNEL_OK")
</pallas_src>

<mosaic_0001>
module attributes {stable_mosaic.version = 11 : i64} {
  func.func @kernel(%arg0: i32, %arg1: i32, %arg2: memref<8x256xf32, #tpu.memory_space<vmem>>, %arg3: memref<8x1xf32, #tpu.memory_space<vmem>>) attributes {dimension_semantics = [#tpu.dimension_semantics<parallel>, #tpu.dimension_semantics<arbitrary>], iteration_bounds = array<i64: 1, 1>, scalar_prefetch = 0 : i64, scratch_operands = 0 : i64, tpu.core_type = #tpu.core_type<tc>, window_params = [{transform_indices = @transform_0, window_bounds = array<i64: 8, 256>}, {transform_indices = @transform_1, window_bounds = array<i64: 8, 1>}]} {
    %c0_i32 = arith.constant 0 : i32
    %0 = arith.cmpi eq, %arg1, %c0_i32 : i32
    %1 = arith.extui %0 : i1 to i32
    %c0_i32_0 = arith.constant 0 : i32
    %2 = arith.cmpi ne, %1, %c0_i32_0 : i32
    scf.if %2 {
      %cst_6 = arith.constant 0xFF800000 : f32
      %9 = vector.broadcast %cst_6 : f32 to vector<8x1xf32>
      %c0_7 = arith.constant 0 : index
      %c0_8 = arith.constant 0 : index
      %10 = vector.load %arg3[%c0_7, %c0_8] : memref<8x1xf32, #tpu.memory_space<vmem>>, vector<8x1xf32>
      tpu.vector_store %arg3[%c0_7, %c0_8], %9 {strides = array<i32>} : memref<8x1xf32, #tpu.memory_space<vmem>>, vector<8x1xf32>,
    } else {
    }
    %c0 = arith.constant 0 : index
    %c0_1 = arith.constant 0 : index
    %3 = vector.load %arg2[%c0, %c0_1] : memref<8x256xf32, #tpu.memory_space<vmem>>, vector<8x256xf32>
    %c0_2 = arith.constant 0 : index
    %c0_3 = arith.constant 0 : index
    %4 = vector.load %arg3[%c0_2, %c0_3] : memref<8x1xf32, #tpu.memory_space<vmem>>, vector<8x1xf32>
    %cst = arith.constant dense<0xFF800000> : vector<8xf32>
    %5 = vector.multi_reduction <maximumf>, %3, %cst [1] : vector<8x256xf32> to vector<8xf32>
    %6 = vector.shape_cast %5 : vector<8xf32> to vector<8x1xf32>
    %7 = arith.maximumf %4, %6 : vector<8x1xf32>
    %c0_4 = arith.constant 0 : index
    %c0_5 = arith.constant 0 : index
    %8 = vector.load %arg3[%c0_4, %c0_5] : memref<8x1xf32, #tpu.memory_space<vmem>>, vector<8x1xf32>
    tpu.vector_store %arg3[%c0_4, %c0_5], %7 {strides = array<i32>} : memref<8x1xf32, #tpu.memory_space<vmem>>, vector<8x1xf32>,
    return
  }
  func.func @transform_0(%arg0: i32, %arg1: i32) -> (i32, i32) {
    %c0_i32 = arith.constant 0 : i32
    return %arg0, %arg1 : i32, i32
  }
  func.func @transform_1(%arg0: i32, %arg1: i32) -> (i32, i32) {
    %c0_i32 = arith.constant 0 : i32
    %c0_i32_0 = arith.constant 0 : i32
    return %arg0, %c0_i32 : i32, i32
  }
}

</mosaic_0001>

<llo_original>
// kernel: tpu_custom_call.1
$region0: #{tpu_custom_call.1}
  #allocation0 [shape = 'u32[]', space=smem, size = 0x4, offset = 0x4, fixed_abs, tag = 'smem constant byte address 0x4 - core index']
  #allocation1 [shape = 'u32[144,128]{1,0:T(1,128)}', space=vmem, size = 0x12000, scoped, tag = 'internal scratch']
  %s0 = inlined_call_operand.hbm [shape: f32[8,256], index: 0, kind: input, shape index: {}]
  %s1 = inlined_call_operand.vmem [shape: f32[8,1], index: 1, kind: output, shape index: {}]
  %s2 = sld [smem:[#allocation0]]
  $region22: #{tpu_custom_call.1} parent=0
    _
  %s4 = ssub.s32 1, %s2
  %s5 = scalar_select 0, %s4, %s2
  $region1: #{tpu_custom_call.1} parent=0
    #allocation2 [shape = 'u8[8192]{0}', space=vmem, size = 0x2000, scoped, tag = 'input window, operand 0, single buffered']
    #allocation3 [shape = 's32[1]{0}', space=sflag, size = 0x4, scoped, tag = 'scoped memory for tpu_custom_call.1']
    %6 = vsyncpa [#allocation3], 0
    // Predicated region
    $region2: #{tpu_custom_call.1} parent=1 // pred_check
      _
    $region3: #{tpu_custom_call.1} parent=1 // pred_check_branch
      %8 = sbr.rel (0) target = $region5
    $region4: #{tpu_custom_call.1} parent=1 // pred_region
      %s10 = ssub.s32 256, 256
      %11 = vsyncadd [#allocation3], %s10
      %s13 = sshll.u32 [#allocation2], 4
      %s14 = int_to_ptr.vmem [resolvable:$true] %s13
      %16 = dma.hbm_to_vmem [thread:$0]  %s0, 256, %s14, [#allocation3]
    $region5: #{tpu_custom_call.1} parent=1 // pred_fallthru
      _
    // Predicated region
    $region6: #{tpu_custom_call.1} parent=1 // pred_check
      _
    $region7: #{tpu_custom_call.1} parent=1 // pred_check_branch
      %18 = sbr.rel (0) target = $region9
    $region8: #{tpu_custom_call.1} parent=1 // pred_region
      %19 = dma.done [#allocation3], 256
    $region9: #{tpu_custom_call.1} parent=1 // pred_fallthru
      _
    %p20 = scmp.eq.s32.totalorder 0, 0
    // Predicated region
    $region10: #{tpu_custom_call.1} parent=1 // pred_check
      %p21 = pneg %p20
    $region11: #{tpu_custom_call.1} parent=1 // pred_check_branch
      %23 = sbr.rel (%p21) target = $region13
    $region12: #{tpu_custom_call.1} parent=1 // pred_region
      %vm24 = vcmask 7168
      %25 = vst.msk [vmem:[%s1] sm:$0xff] %vm24, -inf
    $region13: #{tpu_custom_call.1} parent=1 // pred_fallthru
      _
    %v26 = vld [vmem:[#allocation2] sm:$0xff]
    %v27 = vld [vmem:[#allocation2 + $0x8] sm:$0xff]
    %v28 = vld [vmem:[%s1] sm:$0xff]
    %v29 = vmax.f32 %v26, %v27
    %30 = vmax.xlane.f32.xlu0 %v29
    %v31 = vpop.xlane.xlu0 %30
    %v32 = vmax.f32 %v28, %v31
    %vm33 = vcmask 7168
    %34 = vst.msk [vmem:[%s1] sm:$0xff] %vm33, %v32
    // Predicated region
    $region14: #{tpu_custom_call.1} parent=1 // pred_check
      _
    $region15: #{tpu_custom_call.1} parent=1 // pred_check_branch
      %36 = sbr.rel (0) target = $region17
    $region16: #{tpu_custom_call.1} parent=1 // pred_region
      _
    $region17: #{tpu_custom_call.1} parent=1 // pred_fallthru
      _
    // Predicated region
    $region18: #{tpu_custom_call.1} parent=1 // pred_check
      _
    $region19: #{tpu_custom_call.1} parent=1 // pred_check_branch
      %38 = sbr.rel (0) target = $region21
    $region20: #{tpu_custom_call.1} parent=1 // pred_region
      _
    $region21: #{tpu_custom_call.1} parent=1 // pred_fallthru
      _
    %39 = vsyncpa [#allocation3], 1

</llo_original>
